<compile_context>
chip_gen: v6e
topology: v6e:2x2x1
jax: 0.10.0
libtpu: 0.0.40
codegen_flags: <defaults>
</compile_context>

<pallas_src>
import functools

import jax
import jax.numpy as jnp
from jax.experimental import pallas as pl

# ---- model hyper-params: dim_list = [(DISC, CON), NBIN, N2, N3, NCLS] ----
DISC, CON = 2, 3          # discrete / continuous input features
NBIN = 4                  # thresholds per continuous feature
N2, N3 = 8, 8             # logical nodes per union layer (output = 2*n)
NCLS = 4                  # LR layer outputs
BATCH = 8

O0 = DISC + 2 * NBIN * CON        # BinarizeLayer.output_dim (use_not=False) = 26
O1 = 2 * N2                       # union layer 1 output                     = 16
O2 = 2 * N3                       # union layer 2 output                     = 16
LR_IN = O2 + O1                   # LR input (skip connection concat)        = 32

S1 = 32                           # padded per-node lane segment, union layer 1 (>= O0, pow2)
S2 = 16                           # per-node lane segment, union layer 2        (= O1,  pow2)


def _seg_prod(t, s, n):
    """Product over each contiguous s-lane segment (s = power of two) of t: (R, n*s) -> (R, n).

    Log-depth fold via shrinking lane slices: after folding with shifts s/2, s/4, ..., 1 the
    full-segment product of segment j sits at lane j*s (segment starts are preserved because
    the first operand is always sliced from lane 0)."""
    h = s // 2
    while h >= 1:
        t = t[:, : t.shape[1] - h] * t[:, h:]
        h //= 2
    return jnp.concatenate([t[:, j * s:j * s + 1] for j in range(n)], axis=1)


# ----------------------------- fused Pallas kernel ------------------------------
def _mllp_kernel(x_ref, thr_ref, wc2_ref, wd2_ref, wc3_ref, wd3_ref, wlrT_ref, b_ref,
                 cont_ref, bin_ref, *, disc, con, nbin, n2, n3, s1, s2):
    x = x_ref[...]                                             # (B, disc+con), batch-major
    B = x.shape[0]

    # ---------------- BinarizeLayer (identical for both passes): one wide compare ----------
    x_disc = x[:, :disc]                                       # (B, disc) pass-through
    x_rep = jnp.concatenate(
        [jnp.broadcast_to(x[:, disc + c:disc + c + 1], (B, nbin)) for c in range(con)],
        axis=1)                                                # (B, con*nbin), c-major
    bits = jnp.where(x_rep - thr_ref[...] > 0.0, 1.0, 0.0)     # (B, con*nbin)
    x0 = jnp.concatenate([x_disc, bits, 1.0 - bits], axis=1)   # (B, O0)

    # ------------- binarized-pass weights: thresholded ONCE per packed weight row ----------
    wc2 = wc2_ref[...]; wd2 = wd2_ref[...]                     # (1, n2*s1)
    wc3 = wc3_ref[...]; wd3 = wd3_ref[...]                     # (1, n3*s2)
    wc2b = jnp.where(wc2 > 0.5, 1.0, 0.0)
    wd2b = jnp.where(wd2 > 0.5, 1.0, 0.0)
    wc3b = jnp.where(wc3 > 0.5, 1.0, 0.0)
    wd3b = jnp.where(wd3 > 0.5, 1.0, 0.0)

    def union_layer(x_c, x_b, wc, wcb, wd, wdb, d, s, n):
        """One UnionLayer for BOTH passes.
        x_c / x_b: (B, d) continuous / binarized activations.  wc/wcb/wd/wdb: (1, n*s) packed
        node-major weight rows (zero past d, so padded lanes give a neutral term of 1).
        conj_j = prod_i(1 - (1-x_i) Wc_ji), disj_j = 1 - prod_i(1 - x_i Wd_ji).
        Returns ((B, 2n), (B, 2n)) = (continuous, binarized) outputs [conj | disj]."""
        def widen(xa):                                         # (B, d) -> (B, n*s)
            if s > d:
                xa = jnp.concatenate([xa, jnp.zeros((B, s - d), jnp.float32)], axis=1)
            return jnp.concatenate([xa] * n, axis=1)
        xw_c = widen(x_c)
        xw_b = xw_c if x_b is x_c else widen(x_b)
        # all four term tiles of this layer stacked on sublanes -> one fold pass
        terms = jnp.concatenate([
            1.0 - wc * (1.0 - xw_c),                           # conj, continuous
            1.0 - wcb * (1.0 - xw_b),                          # conj, binarized
            1.0 - wd * xw_c,                                   # disj, continuous
            1.0 - wdb * xw_b,                                  # disj, binarized
        ], axis=0)                                             # (4B, n*s)
        p = _seg_prod(terms, s, n)                             # (4B, n)
        conj_c, conj_b = p[:B, :], p[B:2 * B, :]
        disj_c, disj_b = 1.0 - p[2 * B:3 * B, :], 1.0 - p[3 * B:, :]
        return (jnp.concatenate([conj_c, disj_c], axis=1),
                jnp.concatenate([conj_b, disj_b], axis=1))

    # ---------------- UnionLayer 1 (shared x0) and UnionLayer 2 ----------------
    x1_c, x1_b = union_layer(x0, x0, wc2, wc2b, wd2, wd2b,
                             d=disc + 2 * nbin * con, s=s1, n=n2)
    x2_c, x2_b = union_layer(x1_c, x1_b, wc3, wc3b, wd3, wd3b,
                             d=2 * n2, s=s2, n=n3)

    # -------- skip connection (x_cat = [x2, x1]) + LRLayer: ONE matmul for both passes -----
    xcat = jnp.concatenate([jnp.concatenate([x2_c, x1_c], axis=1),
                            jnp.concatenate([x2_b, x1_b], axis=1)], axis=0)   # (2B, LR_IN)
    out = jnp.dot(xcat, wlrT_ref[...], preferred_element_type=jnp.float32) + b_ref[...]
    cont_ref[...] = out[:B, :]
    bin_ref[...] = out[B:, :]


# ----------------------------- pallas_call wrapper ------------------------
@jax.jit
def mllp_forward(x, params):
    """Returns (continuous_forward(x), binarized_forward(x)) from ONE fused pallas_call.

    Parameters are accepted in their natural PyTorch layouts; the tiny transpose/flatten/pad
    steps below are wrapper-side layout plumbing (traced jnp ops on <1 KB of data) that let
    the kernel run on lane-packed full tiles."""
    B = x.shape[0]
    thr_row = params["t"].T.reshape(1, CON * NBIN)                        # (1, 12), c-major
    wc2_row = jnp.pad(params["wc2"], ((0, 0), (0, S1 - O0))).reshape(1, N2 * S1)
    wd2_row = jnp.pad(params["wd2"], ((0, 0), (0, S1 - O0))).reshape(1, N2 * S1)
    wc3_row = params["wc3"].reshape(1, N3 * S2)
    wd3_row = params["wd3"].reshape(1, N3 * S2)
    wlrT = params["w_lr"].T                                               # (LR_IN, NCLS)
    b_row = params["b_lr"].reshape(1, NCLS)

    kernel = functools.partial(_mllp_kernel, disc=DISC, con=CON, nbin=NBIN,
                               n2=N2, n3=N3, s1=S1, s2=S2)
    cont, binr = pl.pallas_call(
        kernel,
        out_shape=(jax.ShapeDtypeStruct((B, NCLS), jnp.float32),
                   jax.ShapeDtypeStruct((B, NCLS), jnp.float32)),
        # No grid / BlockSpecs / scratch: single invocation, whole arrays VMEM-resident.
        # TODO(synk): for large B add a leading "parallel" batch grid axis (multiples of 8
        # rows) sized against v7x's 32 MiB scoped-VMEM default to use both TensorCores.
    )(x, thr_row, wc2_row, wd2_row, wc3_row, wd3_row, wlrT, b_row)
    # TODO(synk): autograd pieces (Binarize STE / EstimatedProduct backward) are training-only;
    # forward values are identical, so only forward is implemented.
    return cont, binr


# ----------------------------- pure-JAX reference --------------------------
def reference_forward(x, params):
    x_disc, x_con = x[:, :DISC], x[:, DISC:]
    diff = x_con[:, :, None] - params["t"].T[None, :, :]                  # (B, CON, NBIN)
    bits = (diff > 0).astype(jnp.float32).reshape(x.shape[0], -1)
    x0 = jnp.concatenate([x_disc, bits, 1.0 - bits], axis=1)

    def union(xin, wc, wd, binarized):
        if binarized:
            wc = (wc > 0.5).astype(jnp.float32)
            wd = (wd > 0.5).astype(jnp.float32)
        conj = jnp.prod(1.0 - (1.0 - xin)[:, None, :] * wc[None, :, :], axis=-1)
        disj = 1.0 - jnp.prod(1.0 - xin[:, None, :] * wd[None, :, :], axis=-1)
        return jnp.concatenate([conj, disj], axis=1)

    def run(binarized):
        x1 = union(x0, params["wc2"], params["wd2"], binarized)
        x2 = union(x1, params["wc3"], params["wd3"], binarized)
        x_cat = jnp.concatenate([x2, x1], axis=1)
        return x_cat @ params["w_lr"].T + params["b_lr"]

    return run(False), run(True)


# --------------------------------- main -------------------------------------
if __name__ == "__main__":
    key = jax.random.PRNGKey(0)
    k_xd, k_xc, k_t, k_c2, k_d2, k_c3, k_d3, k_w, k_b = jax.random.split(key, 9)

    # deterministic synthetic parameters (shapes follow the module's __init__)
    params = {
        "t": jax.random.uniform(k_t, (NBIN, CON), jnp.float32, -1.0, 1.0),   # BinarizeLayer thresholds
        "wc2": jax.random.uniform(k_c2, (N2, O0), jnp.float32, 0.0, 1.0),    # UnionLayer 1 (conj / disj)
        "wd2": jax.random.uniform(k_d2, (N2, O0), jnp.float32, 0.0, 1.0),
        "wc3": jax.random.uniform(k_c3, (N3, O1), jnp.float32, 0.0, 1.0),    # UnionLayer 2
        "wd3": jax.random.uniform(k_d3, (N3, O1), jnp.float32, 0.0, 1.0),
        "w_lr": jax.random.uniform(k_w, (NCLS, LR_IN), jnp.float32,
                                   -1.0 / jnp.sqrt(LR_IN), 1.0 / jnp.sqrt(LR_IN)),
        "b_lr": jax.random.uniform(k_b, (NCLS,), jnp.float32,
                                   -1.0 / jnp.sqrt(LR_IN), 1.0 / jnp.sqrt(LR_IN)),
    }

    # input: discrete features in {0,1}, continuous features in [-1, 1]
    x_disc = jax.random.bernoulli(k_xd, 0.5, (BATCH, DISC)).astype(jnp.float32)
    x_con = jax.random.uniform(k_xc, (BATCH, CON), jnp.float32, -1.0, 1.0)
    x = jnp.concatenate([x_disc, x_con], axis=1)                              # (BATCH, DISC+CON)

    cont_out, bin_out = mllp_forward(x, params)
    jax.block_until_ready((cont_out, bin_out))

    ref_cont, ref_bin = reference_forward(x, params)
    assert cont_out.shape == (BATCH, NCLS) and bin_out.shape == (BATCH, NCLS)
    assert jnp.allclose(cont_out, ref_cont, rtol=1e-5, atol=1e-5)
    assert jnp.allclose(bin_out, ref_bin, rtol=1e-5, atol=1e-5)

    print("KERNEL_OK")
</pallas_src>

<mosaic_0001>
module attributes {stable_mosaic.version = 11 : i64} {
  func.func @_mllp_kernel(%arg0: memref<8x5xf32, #tpu.memory_space<vmem>>, %arg1: memref<1x12xf32, #tpu.memory_space<vmem>>, %arg2: memref<1x256xf32, #tpu.memory_space<vmem>>, %arg3: memref<1x256xf32, #tpu.memory_space<vmem>>, %arg4: memref<1x128xf32, #tpu.memory_space<vmem>>, %arg5: memref<1x128xf32, #tpu.memory_space<vmem>>, %arg6: memref<32x4xf32, #tpu.memory_space<vmem>>, %arg7: memref<1x4xf32, #tpu.memory_space<vmem>>, %arg8: memref<8x4xf32, #tpu.memory_space<vmem>>, %arg9: memref<8x4xf32, #tpu.memory_space<vmem>>) attributes {dimension_semantics = [], scalar_prefetch = 0 : i64, scratch_operands = 0 : i64, tpu.core_type = #tpu.core_type<tc>} {
    %c0 = arith.constant 0 : index
    %c0_0 = arith.constant 0 : index
    %0 = vector.load %arg0[%c0, %c0_0] : memref<8x5xf32, #tpu.memory_space<vmem>>, vector<8x5xf32>
    %1 = vector.extract_strided_slice %0 {offsets = [0, 0], sizes = [8, 2], strides = [1, 1]} : vector<8x5xf32> to vector<8x2xf32>
    %2 = vector.extract_strided_slice %0 {offsets = [0, 2], sizes = [8, 1], strides = [1, 1]} : vector<8x5xf32> to vector<8x1xf32>
    %3 = vector.shape_cast %2 : vector<8x1xf32> to vector<8x1xf32>
    %4 = vector.broadcast %3 : vector<8x1xf32> to vector<8x4xf32>
    %5 = vector.extract_strided_slice %0 {offsets = [0, 3], sizes = [8, 1], strides = [1, 1]} : vector<8x5xf32> to vector<8x1xf32>
    %6 = vector.shape_cast %5 : vector<8x1xf32> to vector<8x1xf32>
    %7 = vector.broadcast %6 : vector<8x1xf32> to vector<8x4xf32>
    %8 = vector.extract_strided_slice %0 {offsets = [0, 4], sizes = [8, 1], strides = [1, 1]} : vector<8x5xf32> to vector<8x1xf32>
    %9 = vector.shape_cast %8 : vector<8x1xf32> to vector<8x1xf32>
    %10 = vector.broadcast %9 : vector<8x1xf32> to vector<8x4xf32>
    %11 = tpu.concatenate %4, %7, %10 in 1 : vector<8x4xf32>, vector<8x4xf32>, vector<8x4xf32> -> vector<8x12xf32>
    %c0_1 = arith.constant 0 : index
    %c0_2 = arith.constant 0 : index
    %12 = vector.load %arg1[%c0_1, %c0_2] : memref<1x12xf32, #tpu.memory_space<vmem>>, vector<1x12xf32>
    %13 = vector.broadcast %12 : vector<1x12xf32> to vector<8x12xf32>
    %14 = arith.subf %11, %13 : vector<8x12xf32>
    %cst = arith.constant 0.000000e+00 : f32
    %15 = vector.broadcast %cst : f32 to vector<8x12xf32>
    %16 = arith.cmpf ogt, %14, %15 : vector<8x12xf32>
    %cst_3 = arith.constant 1.000000e+00 : f32
    %cst_4 = arith.constant 0.000000e+00 : f32
    %17 = vector.broadcast %cst_3 : f32 to vector<8x12xf32>
    %18 = vector.broadcast %cst_4 : f32 to vector<8x12xf32>
    %19 = arith.select %16, %17, %18 : vector<8x12xi1>, vector<8x12xf32>
    %cst_5 = arith.constant 1.000000e+00 : f32
    %20 = vector.broadcast %cst_5 : f32 to vector<8x12xf32>
    %21 = arith.subf %20, %19 : vector<8x12xf32>
    %22 = tpu.concatenate %1, %19, %21 in 1 : vector<8x2xf32>, vector<8x12xf32>, vector<8x12xf32> -> vector<8x26xf32>
    %c0_6 = arith.constant 0 : index
    %c0_7 = arith.constant 0 : index
    %23 = vector.load %arg2[%c0_6, %c0_7] : memref<1x256xf32, #tpu.memory_space<vmem>>, vector<1x256xf32>
    %c0_8 = arith.constant 0 : index
    %c0_9 = arith.constant 0 : index
    %24 = vector.load %arg3[%c0_8, %c0_9] : memref<1x256xf32, #tpu.memory_space<vmem>>, vector<1x256xf32>
    %c0_10 = arith.constant 0 : index
    %c0_11 = arith.constant 0 : index
    %25 = vector.load %arg4[%c0_10, %c0_11] : memref<1x128xf32, #tpu.memory_space<vmem>>, vector<1x128xf32>
    %c0_12 = arith.constant 0 : index
    %c0_13 = arith.constant 0 : index
    %26 = vector.load %arg5[%c0_12, %c0_13] : memref<1x128xf32, #tpu.memory_space<vmem>>, vector<1x128xf32>
    %cst_14 = arith.constant 5.000000e-01 : f32
    %27 = vector.broadcast %cst_14 : f32 to vector<1x256xf32>
    %28 = arith.cmpf ogt, %23, %27 : vector<1x256xf32>
    %cst_15 = arith.constant 1.000000e+00 : f32
    %cst_16 = arith.constant 0.000000e+00 : f32
    %29 = vector.broadcast %cst_15 : f32 to vector<1x256xf32>
    %30 = vector.broadcast %cst_16 : f32 to vector<1x256xf32>
    %31 = arith.select %28, %29, %30 : vector<1x256xi1>, vector<1x256xf32>
    %cst_17 = arith.constant 5.000000e-01 : f32
    %32 = vector.broadcast %cst_17 : f32 to vector<1x256xf32>
    %33 = arith.cmpf ogt, %24, %32 : vector<1x256xf32>
    %cst_18 = arith.constant 1.000000e+00 : f32
    %cst_19 = arith.constant 0.000000e+00 : f32
    %34 = vector.broadcast %cst_18 : f32 to vector<1x256xf32>
    %35 = vector.broadcast %cst_19 : f32 to vector<1x256xf32>
    %36 = arith.select %33, %34, %35 : vector<1x256xi1>, vector<1x256xf32>
    %cst_20 = arith.constant 5.000000e-01 : f32
    %37 = vector.broadcast %cst_20 : f32 to vector<1x128xf32>
    %38 = arith.cmpf ogt, %25, %37 : vector<1x128xf32>
    %cst_21 = arith.constant 1.000000e+00 : f32
    %cst_22 = arith.constant 0.000000e+00 : f32
    %39 = vector.broadcast %cst_21 : f32 to vector<1x128xf32>
    %40 = vector.broadcast %cst_22 : f32 to vector<1x128xf32>
    %41 = arith.select %38, %39, %40 : vector<1x128xi1>, vector<1x128xf32>
    %cst_23 = arith.constant 5.000000e-01 : f32
    %42 = vector.broadcast %cst_23 : f32 to vector<1x128xf32>
    %43 = arith.cmpf ogt, %26, %42 : vector<1x128xf32>
    %cst_24 = arith.constant 1.000000e+00 : f32
    %cst_25 = arith.constant 0.000000e+00 : f32
    %44 = vector.broadcast %cst_24 : f32 to vector<1x128xf32>
    %45 = vector.broadcast %cst_25 : f32 to vector<1x128xf32>
    %46 = arith.select %43, %44, %45 : vector<1x128xi1>, vector<1x128xf32>
    %cst_26 = arith.constant 0.000000e+00 : f32
    %47 = vector.broadcast %cst_26 : f32 to vector<8x6xf32>
    %48 = tpu.concatenate %22, %47 in 1 : vector<8x26xf32>, vector<8x6xf32> -> vector<8x32xf32>
    %49 = tpu.concatenate %48, %48, %48, %48, %48, %48, %48, %48 in 1 : vector<8x32xf32>, vector<8x32xf32>, vector<8x32xf32>, vector<8x32xf32>, vector<8x32xf32>, vector<8x32xf32>, vector<8x32xf32>, vector<8x32xf32> -> vector<8x256xf32>
    %cst_27 = arith.constant 1.000000e+00 : f32
    %50 = vector.broadcast %cst_27 : f32 to vector<8x256xf32>
    %51 = arith.subf %50, %49 : vector<8x256xf32>
    %52 = vector.broadcast %23 : vector<1x256xf32> to vector<8x256xf32>
    %53 = arith.mulf %52, %51 : vector<8x256xf32>
    %cst_28 = arith.constant 1.000000e+00 : f32
    %54 = vector.broadcast %cst_28 : f32 to vector<8x256xf32>
    %55 = arith.subf %54, %53 : vector<8x256xf32>
    %cst_29 = arith.constant 1.000000e+00 : f32
    %56 = vector.broadcast %cst_29 : f32 to vector<8x256xf32>
    %57 = arith.subf %56, %49 : vector<8x256xf32>
    %58 = vector.broadcast %31 : vector<1x256xf32> to vector<8x256xf32>
    %59 = arith.mulf %58, %57 : vector<8x256xf32>
    %cst_30 = arith.constant 1.000000e+00 : f32
    %60 = vector.broadcast %cst_30 : f32 to vector<8x256xf32>
    %61 = arith.subf %60, %59 : vector<8x256xf32>
    %62 = vector.broadcast %24 : vector<1x256xf32> to vector<8x256xf32>
    %63 = arith.mulf %62, %49 : vector<8x256xf32>
    %cst_31 = arith.constant 1.000000e+00 : f32
    %64 = vector.broadcast %cst_31 : f32 to vector<8x256xf32>
    %65 = arith.subf %64, %63 : vector<8x256xf32>
    %66 = vector.broadcast %36 : vector<1x256xf32> to vector<8x256xf32>
    %67 = arith.mulf %66, %49 : vector<8x256xf32>
    %cst_32 = arith.constant 1.000000e+00 : f32
    %68 = vector.broadcast %cst_32 : f32 to vector<8x256xf32>
    %69 = arith.subf %68, %67 : vector<8x256xf32>
    %70 = tpu.concatenate %55, %61, %65, %69 in 0 : vector<8x256xf32>, vector<8x256xf32>, vector<8x256xf32>, vector<8x256xf32> -> vector<32x256xf32>
    %71 = vector.extract_strided_slice %70 {offsets = [0, 0], sizes = [32, 240], strides = [1, 1]} : vector<32x256xf32> to vector<32x240xf32>
    %72 = vector.extract_strided_slice %70 {offsets = [0, 16], sizes = [32, 240], strides = [1, 1]} : vector<32x256xf32> to vector<32x240xf32>
    %73 = arith.mulf %71, %72 : vector<32x240xf32>
    %74 = vector.extract_strided_slice %73 {offsets = [0, 0], sizes = [32, 232], strides = [1, 1]} : vector<32x240xf32> to vector<32x232xf32>
    %75 = vector.extract_strided_slice %73 {offsets = [0, 8], sizes = [32, 232], strides = [1, 1]} : vector<32x240xf32> to vector<32x232xf32>
    %76 = arith.mulf %74, %75 : vector<32x232xf32>
    %77 = vector.extract_strided_slice %76 {offsets = [0, 0], sizes = [32, 228], strides = [1, 1]} : vector<32x232xf32> to vector<32x228xf32>
    %78 = vector.extract_strided_slice %76 {offsets = [0, 4], sizes = [32, 228], strides = [1, 1]} : vector<32x232xf32> to vector<32x228xf32>
    %79 = arith.mulf %77, %78 : vector<32x228xf32>
    %80 = vector.extract_strided_slice %79 {offsets = [0, 0], sizes = [32, 226], strides = [1, 1]} : vector<32x228xf32> to vector<32x226xf32>
    %81 = vector.extract_strided_slice %79 {offsets = [0, 2], sizes = [32, 226], strides = [1, 1]} : vector<32x228xf32> to vector<32x226xf32>
    %82 = arith.mulf %80, %81 : vector<32x226xf32>
    %83 = vector.extract_strided_slice %82 {offsets = [0, 0], sizes = [32, 225], strides = [1, 1]} : vector<32x226xf32> to vector<32x225xf32>
    %84 = vector.extract_strided_slice %82 {offsets = [0, 1], sizes = [32, 225], strides = [1, 1]} : vector<32x226xf32> to vector<32x225xf32>
    %85 = arith.mulf %83, %84 : vector<32x225xf32>
    %86 = vector.extract_strided_slice %85 {offsets = [0, 0], sizes = [32, 1], strides = [1, 1]} : vector<32x225xf32> to vector<32x1xf32>
    %87 = vector.extract_strided_slice %85 {offsets = [0, 32], sizes = [32, 1], strides = [1, 1]} : vector<32x225xf32> to vector<32x1xf32>
    %88 = vector.extract_strided_slice %85 {offsets = [0, 64], sizes = [32, 1], strides = [1, 1]} : vector<32x225xf32> to vector<32x1xf32>
    %89 = vector.extract_strided_slice %85 {offsets = [0, 96], sizes = [32, 1], strides = [1, 1]} : vector<32x225xf32> to vector<32x1xf32>
    %90 = vector.extract_strided_slice %85 {offsets = [0, 128], sizes = [32, 1], strides = [1, 1]} : vector<32x225xf32> to vector<32x1xf32>
    %91 = vector.extract_strided_slice %85 {offsets = [0, 160], sizes = [32, 1], strides = [1, 1]} : vector<32x225xf32> to vector<32x1xf32>
    %92 = vector.extract_strided_slice %85 {offsets = [0, 192], sizes = [32, 1], strides = [1, 1]} : vector<32x225xf32> to vector<32x1xf32>
    %93 = vector.extract_strided_slice %85 {offsets = [0, 224], sizes = [32, 1], strides = [1, 1]} : vector<32x225xf32> to vector<32x1xf32>
    %94 = tpu.concatenate %86, %87, %88, %89, %90, %91, %92, %93 in 1 : vector<32x1xf32>, vector<32x1xf32>, vector<32x1xf32>, vector<32x1xf32>, vector<32x1xf32>, vector<32x1xf32>, vector<32x1xf32>, vector<32x1xf32> -> vector<32x8xf32>
    %95 = vector.extract_strided_slice %94 {offsets = [0, 0], sizes = [8, 8], strides = [1, 1]} : vector<32x8xf32> to vector<8x8xf32>
    %96 = vector.extract_strided_slice %94 {offsets = [8, 0], sizes = [8, 8], strides = [1, 1]} : vector<32x8xf32> to vector<8x8xf32>
    %97 = vector.extract_strided_slice %94 {offsets = [16, 0], sizes = [8, 8], strides = [1, 1]} : vector<32x8xf32> to vector<8x8xf32>
    %cst_33 = arith.constant 1.000000e+00 : f32
    %98 = vector.broadcast %cst_33 : f32 to vector<8x8xf32>
    %99 = arith.subf %98, %97 : vector<8x8xf32>
    %100 = vector.extract_strided_slice %94 {offsets = [24, 0], sizes = [8, 8], strides = [1, 1]} : vector<32x8xf32> to vector<8x8xf32>
    %cst_34 = arith.constant 1.000000e+00 : f32
    %101 = vector.broadcast %cst_34 : f32 to vector<8x8xf32>
    %102 = arith.subf %101, %100 : vector<8x8xf32>
    %103 = tpu.concatenate %95, %99 in 1 : vector<8x8xf32>, vector<8x8xf32> -> vector<8x16xf32>
    %104 = tpu.concatenate %96, %102 in 1 : vector<8x8xf32>, vector<8x8xf32> -> vector<8x16xf32>
    %105 = tpu.concatenate %103, %103, %103, %103, %103, %103, %103, %103 in 1 : vector<8x16xf32>, vector<8x16xf32>, vector<8x16xf32>, vector<8x16xf32>, vector<8x16xf32>, vector<8x16xf32>, vector<8x16xf32>, vector<8x16xf32> -> vector<8x128xf32>
    %106 = tpu.concatenate %104, %104, %104, %104, %104, %104, %104, %104 in 1 : vector<8x16xf32>, vector<8x16xf32>, vector<8x16xf32>, vector<8x16xf32>, vector<8x16xf32>, vector<8x16xf32>, vector<8x16xf32>, vector<8x16xf32> -> vector<8x128xf32>
    %cst_35 = arith.constant 1.000000e+00 : f32
    %107 = vector.broadcast %cst_35 : f32 to vector<8x128xf32>
    %108 = arith.subf %107, %105 : vector<8x128xf32>
    %109 = vector.broadcast %25 : vector<1x128xf32> to vector<8x128xf32>
    %110 = arith.mulf %109, %108 : vector<8x128xf32>
    %cst_36 = arith.constant 1.000000e+00 : f32
    %111 = vector.broadcast %cst_36 : f32 to vector<8x128xf32>
    %112 = arith.subf %111, %110 : vector<8x128xf32>
    %cst_37 = arith.constant 1.000000e+00 : f32
    %113 = vector.broadcast %cst_37 : f32 to vector<8x128xf32>
    %114 = arith.subf %113, %106 : vector<8x128xf32>
    %115 = vector.broadcast %41 : vector<1x128xf32> to vector<8x128xf32>
    %116 = arith.mulf %115, %114 : vector<8x128xf32>
    %cst_38 = arith.constant 1.000000e+00 : f32
    %117 = vector.broadcast %cst_38 : f32 to vector<8x128xf32>
    %118 = arith.subf %117, %116 : vector<8x128xf32>
    %119 = vector.broadcast %26 : vector<1x128xf32> to vector<8x128xf32>
    %120 = arith.mulf %119, %105 : vector<8x128xf32>
    %cst_39 = arith.constant 1.000000e+00 : f32
    %121 = vector.broadcast %cst_39 : f32 to vector<8x128xf32>
    %122 = arith.subf %121, %120 : vector<8x128xf32>
    %123 = vector.broadcast %46 : vector<1x128xf32> to vector<8x128xf32>
    %124 = arith.mulf %123, %106 : vector<8x128xf32>
    %cst_40 = arith.constant 1.000000e+00 : f32
    %125 = vector.broadcast %cst_40 : f32 to vector<8x128xf32>
    %126 = arith.subf %125, %124 : vector<8x128xf32>
    %127 = tpu.concatenate %112, %118, %122, %126 in 0 : vector<8x128xf32>, vector<8x128xf32>, vector<8x128xf32>, vector<8x128xf32> -> vector<32x128xf32>
    %128 = vector.extract_strided_slice %127 {offsets = [0, 0], sizes = [32, 120], strides = [1, 1]} : vector<32x128xf32> to vector<32x120xf32>
    %129 = vector.extract_strided_slice %127 {offsets = [0, 8], sizes = [32, 120], strides = [1, 1]} : vector<32x128xf32> to vector<32x120xf32>
    %130 = arith.mulf %128, %129 : vector<32x120xf32>
    %131 = vector.extract_strided_slice %130 {offsets = [0, 0], sizes = [32, 116], strides = [1, 1]} : vector<32x120xf32> to vector<32x116xf32>
    %132 = vector.extract_strided_slice %130 {offsets = [0, 4], sizes = [32, 116], strides = [1, 1]} : vector<32x120xf32> to vector<32x116xf32>
    %133 = arith.mulf %131, %132 : vector<32x116xf32>
    %134 = vector.extract_strided_slice %133 {offsets = [0, 0], sizes = [32, 114], strides = [1, 1]} : vector<32x116xf32> to vector<32x114xf32>
    %135 = vector.extract_strided_slice %133 {offsets = [0, 2], sizes = [32, 114], strides = [1, 1]} : vector<32x116xf32> to vector<32x114xf32>
    %136 = arith.mulf %134, %135 : vector<32x114xf32>
    %137 = vector.extract_strided_slice %136 {offsets = [0, 0], sizes = [32, 113], strides = [1, 1]} : vector<32x114xf32> to vector<32x113xf32>
    %138 = vector.extract_strided_slice %136 {offsets = [0, 1], sizes = [32, 113], strides = [1, 1]} : vector<32x114xf32> to vector<32x113xf32>
    %139 = arith.mulf %137, %138 : vector<32x113xf32>
    %140 = vector.extract_strided_slice %139 {offsets = [0, 0], sizes = [32, 1], strides = [1, 1]} : vector<32x113xf32> to vector<32x1xf32>
    %141 = vector.extract_strided_slice %139 {offsets = [0, 16], sizes = [32, 1], strides = [1, 1]} : vector<32x113xf32> to vector<32x1xf32>
    %142 = vector.extract_strided_slice %139 {offsets = [0, 32], sizes = [32, 1], strides = [1, 1]} : vector<32x113xf32> to vector<32x1xf32>
    %143 = vector.extract_strided_slice %139 {offsets = [0, 48], sizes = [32, 1], strides = [1, 1]} : vector<32x113xf32> to vector<32x1xf32>
    %144 = vector.extract_strided_slice %139 {offsets = [0, 64], sizes = [32, 1], strides = [1, 1]} : vector<32x113xf32> to vector<32x1xf32>
    %145 = vector.extract_strided_slice %139 {offsets = [0, 80], sizes = [32, 1], strides = [1, 1]} : vector<32x113xf32> to vector<32x1xf32>
    %146 = vector.extract_strided_slice %139 {offsets = [0, 96], sizes = [32, 1], strides = [1, 1]} : vector<32x113xf32> to vector<32x1xf32>
    %147 = vector.extract_strided_slice %139 {offsets = [0, 112], sizes = [32, 1], strides = [1, 1]} : vector<32x113xf32> to vector<32x1xf32>
    %148 = tpu.concatenate %140, %141, %142, %143, %144, %145, %146, %147 in 1 : vector<32x1xf32>, vector<32x1xf32>, vector<32x1xf32>, vector<32x1xf32>, vector<32x1xf32>, vector<32x1xf32>, vector<32x1xf32>, vector<32x1xf32> -> vector<32x8xf32>
    %149 = vector.extract_strided_slice %148 {offsets = [0, 0], sizes = [8, 8], strides = [1, 1]} : vector<32x8xf32> to vector<8x8xf32>
    %150 = vector.extract_strided_slice %148 {offsets = [8, 0], sizes = [8, 8], strides = [1, 1]} : vector<32x8xf32> to vector<8x8xf32>
    %151 = vector.extract_strided_slice %148 {offsets = [16, 0], sizes = [8, 8], strides = [1, 1]} : vector<32x8xf32> to vector<8x8xf32>
    %cst_41 = arith.constant 1.000000e+00 : f32
    %152 = vector.broadcast %cst_41 : f32 to vector<8x8xf32>
    %153 = arith.subf %152, %151 : vector<8x8xf32>
    %154 = vector.extract_strided_slice %148 {offsets = [24, 0], sizes = [8, 8], strides = [1, 1]} : vector<32x8xf32> to vector<8x8xf32>
    %cst_42 = arith.constant 1.000000e+00 : f32
    %155 = vector.broadcast %cst_42 : f32 to vector<8x8xf32>
    %156 = arith.subf %155, %154 : vector<8x8xf32>
    %157 = tpu.concatenate %149, %153 in 1 : vector<8x8xf32>, vector<8x8xf32> -> vector<8x16xf32>
    %158 = tpu.concatenate %150, %156 in 1 : vector<8x8xf32>, vector<8x8xf32> -> vector<8x16xf32>
    %159 = tpu.concatenate %157, %103 in 1 : vector<8x16xf32>, vector<8x16xf32> -> vector<8x32xf32>
    %160 = tpu.concatenate %158, %104 in 1 : vector<8x16xf32>, vector<8x16xf32> -> vector<8x32xf32>
    %161 = tpu.concatenate %159, %160 in 0 : vector<8x32xf32>, vector<8x32xf32> -> vector<16x32xf32>
    %c0_43 = arith.constant 0 : index
    %c0_44 = arith.constant 0 : index
    %162 = vector.load %arg6[%c0_43, %c0_44] : memref<32x4xf32, #tpu.memory_space<vmem>>, vector<32x4xf32>
    %cst_45 = arith.constant dense<0.000000e+00> : vector<16x4xf32>
    %163 = tpu.matmul %161, %162, %cst_45 {dimension_numbers = #tpu.dot_dimension_numbers<[1], [0], [0], [1], [0, 0, 1, 1], [], []>} : vector<16x32xf32>, vector<32x4xf32>, vector<16x4xf32> -> vector<16x4xf32>
    %c0_46 = arith.constant 0 : index
    %c0_47 = arith.constant 0 : index
    %164 = vector.load %arg7[%c0_46, %c0_47] : memref<1x4xf32, #tpu.memory_space<vmem>>, vector<1x4xf32>
    %165 = vector.broadcast %164 : vector<1x4xf32> to vector<16x4xf32>
    %166 = arith.addf %163, %165 : vector<16x4xf32>
    %167 = vector.extract_strided_slice %166 {offsets = [0, 0], sizes = [8, 4], strides = [1, 1]} : vector<16x4xf32> to vector<8x4xf32>
    %c0_48 = arith.constant 0 : index
    %c0_49 = arith.constant 0 : index
    %168 = vector.load %arg8[%c0_48, %c0_49] : memref<8x4xf32, #tpu.memory_space<vmem>>, vector<8x4xf32>
    tpu.vector_store %arg8[%c0_48, %c0_49], %167 {strides = array<i32>} : memref<8x4xf32, #tpu.memory_space<vmem>>, vector<8x4xf32>,
    %169 = vector.extract_strided_slice %166 {offsets = [8, 0], sizes = [8, 4], strides = [1, 1]} : vector<16x4xf32> to vector<8x4xf32>
    %c0_50 = arith.constant 0 : index
    %c0_51 = arith.constant 0 : index
    %170 = vector.load %arg9[%c0_50, %c0_51] : memref<8x4xf32, #tpu.memory_space<vmem>>, vector<8x4xf32>
    tpu.vector_store %arg9[%c0_50, %c0_51], %169 {strides = array<i32>} : memref<8x4xf32, #tpu.memory_space<vmem>>, vector<8x4xf32>,
    return
  }
}

</mosaic_0001>

<llo_original>
// kernel: mllp_forward.1
$region0: #{mllp_forward.1}
  #allocation0 [shape = 'u32[]', space=smem, size = 0x4, offset = 0x4, fixed_abs, tag = 'smem constant byte address 0x4 - core index']
  #allocation1 [shape = 'u32[144,128]{1,0:T(1,128)}', space=vmem, size = 0x12000, scoped, tag = 'internal scratch']
  %s0 = inlined_call_operand.vmem [shape: f32[8,5], index: 0, kind: input, shape index: {}]
  %s1 = inlined_call_operand.vmem [shape: f32[1,12], index: 1, kind: input, shape index: {}]
  %s2 = inlined_call_operand.vmem [shape: f32[1,256], index: 2, kind: input, shape index: {}]
  %s3 = inlined_call_operand.vmem [shape: f32[1,256], index: 3, kind: input, shape index: {}]
  %s4 = inlined_call_operand.vmem [shape: f32[1,128], index: 4, kind: input, shape index: {}]
  %s5 = inlined_call_operand.vmem [shape: f32[1,128], index: 5, kind: input, shape index: {}]
  %s6 = inlined_call_operand.vmem [shape: f32[32,4], index: 6, kind: input, shape index: {}]
  %s7 = inlined_call_operand.vmem [shape: f32[1,4], index: 7, kind: input, shape index: {}]
  %s8 = inlined_call_operand.vmem [shape: f32[8,4], index: 8, kind: output, shape index: {0}]
  %s9 = inlined_call_operand.vmem [shape: f32[8,4], index: 9, kind: output, shape index: {1}]
  %10 = xla_tuple %s8, %s9
  %s11 = sld [smem:[#allocation0]]
  $region50: #{mllp_forward.1} parent=0
    _
  %s13 = ssub.s32 1, %s11
  %s14 = scalar_select 0, %s13, %s11
  // Predicated region
  $region2: #{mllp_forward.1} parent=0 // pred_check
    _
  $region3: #{mllp_forward.1} parent=0 // pred_check_branch
    %16 = sbr.rel (0) target = $region5
  $region4: #{mllp_forward.1} parent=0 // pred_region
    _
  $region5: #{mllp_forward.1} parent=0 // pred_fallthru
    _
  // Predicated region
  $region6: #{mllp_forward.1} parent=0 // pred_check
    _
  $region7: #{mllp_forward.1} parent=0 // pred_check_branch
    %18 = sbr.rel (0) target = $region9
  $region8: #{mllp_forward.1} parent=0 // pred_region
    _
  $region9: #{mllp_forward.1} parent=0 // pred_fallthru
    _
  // Predicated region
  $region10: #{mllp_forward.1} parent=0 // pred_check
    _
  $region11: #{mllp_forward.1} parent=0 // pred_check_branch
    %20 = sbr.rel (0) target = $region13
  $region12: #{mllp_forward.1} parent=0 // pred_region
    _
  $region13: #{mllp_forward.1} parent=0 // pred_fallthru
    _
  // Predicated region
  $region14: #{mllp_forward.1} parent=0 // pred_check
    _
  $region15: #{mllp_forward.1} parent=0 // pred_check_branch
    %22 = sbr.rel (0) target = $region17
  $region16: #{mllp_forward.1} parent=0 // pred_region
    _
  $region17: #{mllp_forward.1} parent=0 // pred_fallthru
    _
  // Predicated region
  $region18: #{mllp_forward.1} parent=0 // pred_check
    _
  $region19: #{mllp_forward.1} parent=0 // pred_check_branch
    %24 = sbr.rel (0) target = $region21
  $region20: #{mllp_forward.1} parent=0 // pred_region
    _
  $region21: #{mllp_forward.1} parent=0 // pred_fallthru
    _
  // Predicated region
  $region22: #{mllp_forward.1} parent=0 // pred_check
    _
  $region23: #{mllp_forward.1} parent=0 // pred_check_branch
    %26 = sbr.rel (0) target = $region25
  $region24: #{mllp_forward.1} parent=0 // pred_region
    _
  $region25: #{mllp_forward.1} parent=0 // pred_fallthru
    _
  // Predicated region
  $region26: #{mllp_forward.1} parent=0 // pred_check
    _
  $region27: #{mllp_forward.1} parent=0 // pred_check_branch
    %28 = sbr.rel (0) target = $region29
  $region28: #{mllp_forward.1} parent=0 // pred_region
    _
  $region29: #{mllp_forward.1} parent=0 // pred_fallthru
    _
  // Predicated region
  $region30: #{mllp_forward.1} parent=0 // pred_check
    _
  $region31: #{mllp_forward.1} parent=0 // pred_check_branch
    %30 = sbr.rel (0) target = $region33
  $region32: #{mllp_forward.1} parent=0 // pred_region
    _
  $region33: #{mllp_forward.1} parent=0 // pred_fallthru
    _
  %v31 = vld [vmem:[%s0] sm:$0xff]
  %33 = vset.pattern.permute.xlu0 2
  %34 = vperm.xlu0 %33, %v31
  %v35 = vpop.permute.xlu0 %34
  %37 = vset.pattern.permute.xlu0 3
  %38 = vperm.xlu0 %37, %v31
  %v39 = vpop.permute.xlu0 %38
  %41 = vset.pattern.permute.xlu0 4
  %42 = vperm.xlu0 %41, %v31
  %v43 = vpop.permute.xlu0 %42
  %vm45 = vcmask 31744
  %v46 = vsel %vm45, %v35, %v39
  %vm47 = vcmask 64512
  %v48 = vsel %vm47, %v46, %v43
  %v49 = vld [vmem:[%s1] sm:$0x1]
  %v51 = vlaneseq
  %v52 = vshrl.u32 %v51, 7
  %v53 = vsub.s32 0, %v52
  %v54 = vrot.slane %v49, %v53
  %v56 = vsub.f32 %v48, %v54
  %vm57 = vcmp.gt.f32.partialorder %v56, 0.0
  %v58 = vsel %vm57, 1.0, 0.0
  %v59 = vsub.f32 1.0, %v58
  %61 = vrot.lane.b32.xlu0 %v58, 2
  %v62 = vpop.permute.xlu0 %61
  %65 = vrot.lane.b32.xlu0 %v59, 14
  %v66 = vpop.permute.xlu0 %65
  %vm68 = vcmask 15360
  %v69 = vsel %vm68, %v31, %v62
  %vm70 = vcmask 113664
  %v71 = vsel %vm70, %v69, %v66
  %v72 = vld [vmem:[%s2] sm:$0x3]
  %v73 = vld [vmem:[%s3] sm:$0x3]
  %v74 = vld [vmem:[%s4] sm:$0x1]
  %v75 = vld [vmem:[%s5] sm:$0x1]
  %vm76 = vcmp.gt.f32.partialorder %v72, 0.5
  %v77 = vsel %vm76, 1.0, 0.0
  %vm78 = vcmp.gt.f32.partialorder %v73, 0.5
  %v79 = vsel %vm78, 1.0, 0.0
  %vm80 = vcmp.gt.f32.partialorder %v74, 0.5
  %v81 = vsel %vm80, 1.0, 0.0
  %vm82 = vcmp.gt.f32.partialorder %v75, 0.5
  %v83 = vsel %vm82, 1.0, 0.0
  %vm84 = vcmask 211968
  %v85 = vsel %vm84, %v71, 0.0
  %87 = vrot.lane.b32.xlu0 %v85, 32
  %v88 = vpop.permute.xlu0 %87
  %90 = vrot.lane.b32.xlu0 %v85, 64
  %v91 = vpop.permute.xlu0 %90
  %93 = vrot.lane.b32.xlu0 %v85, 96
  %v94 = vpop.permute.xlu0 %93
  %vm96 = vcmask 261120
  %v97 = vsel %vm96, %v85, %v88
  %vm98 = vcmask 523264
  %v99 = vsel %vm98, %v97, %v91
  %vm100 = vcmask 785408
  %v101 = vsel %vm100, %v99, %v94
  %v102 = vsub.f32 1.0, %v101
  %v104 = vlaneseq
  %v105 = vshrl.u32 %v104, 7
  %v106 = vsub.s32 0, %v105
  %v107 = vrot.slane %v72, %v106
  %v108 = vlaneseq
  %v109 = vshrl.u32 %v108, 7
  %v110 = vsub.s32 1, %v109
  %v111 = vrot.slane %v72, %v110
  %v114 = vmul.f32 %v107, %v102
  %v115 = vmul.f32 %v111, %v102
  %v116 = vsub.f32 1.0, %v114
  %v117 = vsub.f32 1.0, %v115
  %v119 = vlaneseq
  %v120 = vshrl.u32 %v119, 7
  %v121 = vsub.s32 0, %v120
  %v122 = vrot.slane %v77, %v121
  %v123 = vlaneseq
  %v124 = vshrl.u32 %v123, 7
  %v125 = vsub.s32 1, %v124
  %v126 = vrot.slane %v77, %v125
  %v129 = vmul.f32 %v122, %v102
  %v130 = vmul.f32 %v126, %v102
  %v131 = vsub.f32 1.0, %v129
  %v132 = vsub.f32 1.0, %v130
  %v134 = vlaneseq
  %v135 = vshrl.u32 %v134, 7
  %v136 = vsub.s32 0, %v135
  %v137 = vrot.slane %v73, %v136
  %v138 = vlaneseq
  %v139 = vshrl.u32 %v138, 7
  %v140 = vsub.s32 1, %v139
  %v141 = vrot.slane %v73, %v140
  %v144 = vmul.f32 %v137, %v101
  %v145 = vmul.f32 %v141, %v101
  %v146 = vsub.f32 1.0, %v144
  %v147 = vsub.f32 1.0, %v145
  %v149 = vlaneseq
  %v150 = vshrl.u32 %v149, 7
  %v151 = vsub.s32 0, %v150
  %v152 = vrot.slane %v79, %v151
  %v153 = vlaneseq
  %v154 = vshrl.u32 %v153, 7
  %v155 = vsub.s32 1, %v154
  %v156 = vrot.slane %v79, %v155
  %v159 = vmul.f32 %v152, %v101
  %v160 = vmul.f32 %v156, %v101
  %v161 = vsub.f32 1.0, %v159
  %v162 = vsub.f32 1.0, %v160
  %171 = vrot.lane.b32.xlu0 %v116, 112
  %v172 = vpop.permute.xlu0 %171
  %173 = vrot.lane.b32.xlu0 %v117, 112
  %v174 = vpop.permute.xlu0 %173
  %175 = vrot.lane.b32.xlu0 %v131, 112
  %v176 = vpop.permute.xlu0 %175
  %177 = vrot.lane.b32.xlu0 %v132, 112
  %v178 = vpop.permute.xlu0 %177
  %179 = vrot.lane.b32.xlu0 %v146, 112
  %v180 = vpop.permute.xlu0 %179
  %181 = vrot.lane.b32.xlu0 %v147, 112
  %v182 = vpop.permute.xlu0 %181
  %183 = vrot.lane.b32.xlu0 %v161, 112
  %v184 = vpop.permute.xlu0 %183
  %185 = vrot.lane.b32.xlu0 %v162, 112
  %v186 = vpop.permute.xlu0 %185
  %vm187 = vcmask 916480
  %v188 = vsel %vm187, %v172, %v174
  %v189 = vsel %vm187, %v176, %v178
  %v190 = vsel %vm187, %v180, %v182
  %v191 = vsel %vm187, %v184, %v186
  %v200 = vmul.f32 %v116, %v188
  %v201 = vmul.f32 %v117, %v174
  %v202 = vmul.f32 %v131, %v189
  %v203 = vmul.f32 %v132, %v178
  %v204 = vmul.f32 %v146, %v190
  %v205 = vmul.f32 %v147, %v182
  %v206 = vmul.f32 %v161, %v191
  %v207 = vmul.f32 %v162, %v186
  %216 = vrot.lane.b32.xlu0 %v200, 120
  %v217 = vpop.permute.xlu0 %216
  %218 = vrot.lane.b32.xlu0 %v201, 120
  %v219 = vpop.permute.xlu0 %218
  %220 = vrot.lane.b32.xlu0 %v202, 120
  %v221 = vpop.permute.xlu0 %220
  %222 = vrot.lane.b32.xlu0 %v203, 120
  %v223 = vpop.permute.xlu0 %222
  %224 = vrot.lane.b32.xlu0 %v204, 120
  %v225 = vpop.permute.xlu0 %224
  %226 = vrot.lane.b32.xlu0 %v205, 120
  %v227 = vpop.permute.xlu0 %226
  %228 = vrot.lane.b32.xlu0 %v206, 120
  %v229 = vpop.permute.xlu0 %228
  %230 = vrot.lane.b32.xlu0 %v207, 120
  %v231 = vpop.permute.xlu0 %230
  %vm232 = vcmask 982016
  %v233 = vsel %vm232, %v217, %v219
  %v234 = vsel %vm232, %v221, %v223
  %v235 = vsel %vm232, %v225, %v227
  %v236 = vsel %vm232, %v229, %v231
  %v245 = vmul.f32 %v200, %v233
  %v246 = vmul.f32 %v201, %v219
  %v247 = vmul.f32 %v202, %v234
  %v248 = vmul.f32 %v203, %v223
  %v249 = vmul.f32 %v204, %v235
  %v250 = vmul.f32 %v205, %v227
  %v251 = vmul.f32 %v206, %v236
  %v252 = vmul.f32 %v207, %v231
  %261 = vrot.lane.b32.xlu0 %v245, 124
  %v262 = vpop.permute.xlu0 %261
  %263 = vrot.lane.b32.xlu0 %v246, 124
  %v264 = vpop.permute.xlu0 %263
  %265 = vrot.lane.b32.xlu0 %v247, 124
  %v266 = vpop.permute.xlu0 %265
  %267 = vrot.lane.b32.xlu0 %v248, 124
  %v268 = vpop.permute.xlu0 %267
  %269 = vrot.lane.b32.xlu0 %v249, 124
  %v270 = vpop.permute.xlu0 %269
  %271 = vrot.lane.b32.xlu0 %v250, 124
  %v272 = vpop.permute.xlu0 %271
  %273 = vrot.lane.b32.xlu0 %v251, 124
  %v274 = vpop.permute.xlu0 %273
  %275 = vrot.lane.b32.xlu0 %v252, 124
  %v276 = vpop.permute.xlu0 %275
  %vm277 = vcmask 1014784
  %v278 = vsel %vm277, %v262, %v264
  %v279 = vsel %vm277, %v266, %v268
  %v280 = vsel %vm277, %v270, %v272
  %v281 = vsel %vm277, %v274, %v276
  %v290 = vmul.f32 %v245, %v278
  %v291 = vmul.f32 %v246, %v264
  %v292 = vmul.f32 %v247, %v279
  %v293 = vmul.f32 %v248, %v268
  %v294 = vmul.f32 %v249, %v280
  %v295 = vmul.f32 %v250, %v272
  %v296 = vmul.f32 %v251, %v281
  %v297 = vmul.f32 %v252, %v276
  %306 = vrot.lane.b32.xlu0 %v290, 126
  %v307 = vpop.permute.xlu0 %306
  %308 = vrot.lane.b32.xlu0 %v291, 126
  %v309 = vpop.permute.xlu0 %308
  %310 = vrot.lane.b32.xlu0 %v292, 126
  %v311 = vpop.permute.xlu0 %310
  %312 = vrot.lane.b32.xlu0 %v293, 126
  %v313 = vpop.permute.xlu0 %312
  %314 = vrot.lane.b32.xlu0 %v294, 126
  %v315 = vpop.permute.xlu0 %314
  %316 = vrot.lane.b32.xlu0 %v295, 126
  %v317 = vpop.permute.xlu0 %316
  %318 = vrot.lane.b32.xlu0 %v296, 126
  %v319 = vpop.permute.xlu0 %318
  %320 = vrot.lane.b32.xlu0 %v297, 126
  %v321 = vpop.permute.xlu0 %320
  %vm322 = vcmask 1031168
  %v323 = vsel %vm322, %v307, %v309
  %v324 = vsel %vm322, %v311, %v313
  %v325 = vsel %vm322, %v315, %v317
  %v326 = vsel %vm322, %v319, %v321
  %v335 = vmul.f32 %v290, %v323
  %v336 = vmul.f32 %v291, %v309
  %v337 = vmul.f32 %v292, %v324
  %v338 = vmul.f32 %v293, %v313
  %v339 = vmul.f32 %v294, %v325
  %v340 = vmul.f32 %v295, %v317
  %v341 = vmul.f32 %v296, %v326
  %v342 = vmul.f32 %v297, %v321
  %351 = vrot.lane.b32.xlu0 %v335, 127
  %v352 = vpop.permute.xlu0 %351
  %353 = vrot.lane.b32.xlu0 %v336, 127
  %v354 = vpop.permute.xlu0 %353
  %355 = vrot.lane.b32.xlu0 %v337, 127
  %v356 = vpop.permute.xlu0 %355
  %357 = vrot.lane.b32.xlu0 %v338, 127
  %v358 = vpop.permute.xlu0 %357
  %359 = vrot.lane.b32.xlu0 %v339, 127
  %v360 = vpop.permute.xlu0 %359
  %361 = vrot.lane.b32.xlu0 %v340, 127
  %v362 = vpop.permute.xlu0 %361
  %363 = vrot.lane.b32.xlu0 %v341, 127
  %v364 = vpop.permute.xlu0 %363
  %365 = vrot.lane.b32.xlu0 %v342, 127
  %v366 = vpop.permute.xlu0 %365
  %vm367 = vcmask 1039360
  %v368 = vsel %vm367, %v352, %v354
  %v369 = vsel %vm367, %v356, %v358
  %v370 = vsel %vm367, %v360, %v362
  %v371 = vsel %vm367, %v364, %v366
  %v380 = vmul.f32 %v335, %v368
  %v381 = vmul.f32 %v336, %v354
  %v382 = vmul.f32 %v337, %v369
  %v383 = vmul.f32 %v338, %v358
  %v384 = vmul.f32 %v339, %v370
  %v385 = vmul.f32 %v340, %v362
  %v386 = vmul.f32 %v341, %v371
  %v387 = vmul.f32 %v342, %v366
  %392 = vrot.lane.b32.xlu0 %v380, 97
  %v393 = vpop.permute.xlu0 %392
  %394 = vrot.lane.b32.xlu0 %v382, 97
  %v395 = vpop.permute.xlu0 %394
  %396 = vrot.lane.b32.xlu0 %v384, 97
  %v397 = vpop.permute.xlu0 %396
  %398 = vrot.lane.b32.xlu0 %v386, 97
  %v399 = vpop.permute.xlu0 %398
  %404 = vrot.lane.b32.xlu0 %v380, 66
  %v405 = vpop.permute.xlu0 %404
  %406 = vrot.lane.b32.xlu0 %v382, 66
  %v407 = vpop.permute.xlu0 %406
  %408 = vrot.lane.b32.xlu0 %v384, 66
  %v409 = vpop.permute.xlu0 %408
  %410 = vrot.lane.b32.xlu0 %v386, 66
  %v411 = vpop.permute.xlu0 %410
  %416 = vrot.lane.b32.xlu0 %v380, 35
  %v417 = vpop.permute.xlu0 %416
  %418 = vrot.lane.b32.xlu0 %v382, 35
  %v419 = vpop.permute.xlu0 %418
  %420 = vrot.lane.b32.xlu0 %v384, 35
  %v421 = vpop.permute.xlu0 %420
  %422 = vrot.lane.b32.xlu0 %v386, 35
  %v423 = vpop.permute.xlu0 %422
  %432 = vrot.lane.b32.xlu0 %v381, 4
  %v433 = vpop.permute.xlu0 %432
  %434 = vrot.lane.b32.xlu0 %v383, 4
  %v435 = vpop.permute.xlu0 %434
  %436 = vrot.lane.b32.xlu0 %v385, 4
  %v437 = vpop.permute.xlu0 %436
  %438 = vrot.lane.b32.xlu0 %v387, 4
  %v439 = vpop.permute.xlu0 %438
  %444 = vrot.lane.b32.xlu0 %v381, 101
  %v445 = vpop.permute.xlu0 %444
  %446 = vrot.lane.b32.xlu0 %v383, 101
  %v447 = vpop.permute.xlu0 %446
  %448 = vrot.lane.b32.xlu0 %v385, 101
  %v449 = vpop.permute.xlu0 %448
  %450 = vrot.lane.b32.xlu0 %v387, 101
  %v451 = vpop.permute.xlu0 %450
  %456 = vrot.lane.b32.xlu0 %v381, 70
  %v457 = vpop.permute.xlu0 %456
  %458 = vrot.lane.b32.xlu0 %v383, 70
  %v459 = vpop.permute.xlu0 %458
  %460 = vrot.lane.b32.xlu0 %v385, 70
  %v461 = vpop.permute.xlu0 %460
  %462 = vrot.lane.b32.xlu0 %v387, 70
  %v463 = vpop.permute.xlu0 %462
  %468 = vrot.lane.b32.xlu0 %v381, 39
  %v469 = vpop.permute.xlu0 %468
  %470 = vrot.lane.b32.xlu0 %v383, 39
  %v471 = vpop.permute.xlu0 %470
  %472 = vrot.lane.b32.xlu0 %v385, 39
  %v473 = vpop.permute.xlu0 %472
  %474 = vrot.lane.b32.xlu0 %v387, 39
  %v475 = vpop.permute.xlu0 %474
  %vm480 = vcmask 7168
  %v481 = vsel %vm480, %v380, %v393
  %v482 = vsel %vm480, %v382, %v395
  %v483 = vsel %vm480, %v384, %v397
  %v484 = vsel %vm480, %v386, %v399
  %v485 = vsel %vm68, %v481, %v405
  %v486 = vsel %vm68, %v482, %v407
  %v487 = vsel %vm68, %v483, %v409
  %v488 = vsel %vm68, %v484, %v411
  %vm489 = vcmask 23552
  %v490 = vsel %vm489, %v485, %v417
  %v491 = vsel %vm489, %v486, %v419
  %v492 = vsel %vm489, %v487, %v421
  %v493 = vsel %vm489, %v488, %v423
  %v494 = vsel %vm45, %v490, %v433
  %v495 = vsel %vm45, %v491, %v435
  %v496 = vsel %vm45, %v492, %v437
  %v497 = vsel %vm45, %v493, %v439
  %vm498 = vcmask 39936
  %v499 = vsel %vm498, %v494, %v445
  %v500 = vsel %vm498, %v495, %v447
  %v501 = vsel %vm498, %v496, %v449
  %v502 = vsel %vm498, %v497, %v451
  %vm503 = vcmask 48128
  %v504 = vsel %vm503, %v499, %v457
  %v505 = vsel %vm503, %v500, %v459
  %v506 = vsel %vm503, %v501, %v461
  %v507 = vsel %vm503, %v502, %v463
  %vm508 = vcmask 56320
  %v509 = vsel %vm508, %v504, %v469
  %v510 = vsel %vm508, %v505, %v471
  %v511 = vsel %vm508, %v506, %v473
  %v512 = vsel %vm508, %v507, %v475
  %v513 = vsub.f32 1.0, %v511
  %v514 = vsub.f32 1.0, %v512
  %516 = vrot.lane.b32.xlu0 %v513, 8
  %v517 = vpop.permute.xlu0 %516
  %v519 = vsel %vm47, %v509, %v517
  %521 = vrot.lane.b32.xlu0 %v514, 8
  %v522 = vpop.permute.xlu0 %521
  %v524 = vsel %vm47, %v510, %v522
  %526 = vrot.lane.b32.xlu0 %v519, 16
  %v527 = vpop.permute.xlu0 %526
  %529 = vrot.lane.b32.xlu0 %v519, 32
  %v530 = vpop.permute.xlu0 %529
  %532 = vrot.lane.b32.xlu0 %v519, 48
  %v533 = vpop.permute.xlu0 %532
  %535 = vrot.lane.b32.xlu0 %v519, 64
  %v536 = vpop.permute.xlu0 %535
  %538 = vrot.lane.b32.xlu0 %v519, 80
  %v539 = vpop.permute.xlu0 %538
  %541 = vrot.lane.b32.xlu0 %v519, 96
  %v542 = vpop.permute.xlu0 %541
  %544 = vrot.lane.b32.xlu0 %v519, 112
  %v545 = vpop.permute.xlu0 %544
  %vm547 = vcmask 130048
  %v548 = vsel %vm547, %v519, %v527
  %v549 = vsel %vm96, %v548, %v530
  %vm550 = vcmask 392192
  %v551 = vsel %vm550, %v549, %v533
  %v552 = vsel %vm98, %v551, %v536
  %vm553 = vcmask 654336
  %v554 = vsel %vm553, %v552, %v539
  %v555 = vsel %vm100, %v554, %v542
  %v556 = vsel %vm187, %v555, %v545
  %558 = vrot.lane.b32.xlu0 %v524, 16
  %v559 = vpop.permute.xlu0 %558
  %561 = vrot.lane.b32.xlu0 %v524, 32
  %v562 = vpop.permute.xlu0 %561
  %564 = vrot.lane.b32.xlu0 %v524, 48
  %v565 = vpop.permute.xlu0 %564
  %567 = vrot.lane.b32.xlu0 %v524, 64
  %v568 = vpop.permute.xlu0 %567
  %570 = vrot.lane.b32.xlu0 %v524, 80
  %v571 = vpop.permute.xlu0 %570
  %573 = vrot.lane.b32.xlu0 %v524, 96
  %v574 = vpop.permute.xlu0 %573
  %576 = vrot.lane.b32.xlu0 %v524, 112
  %v577 = vpop.permute.xlu0 %576
  %v579 = vsel %vm547, %v524, %v559
  %v580 = vsel %vm96, %v579, %v562
  %v581 = vsel %vm550, %v580, %v565
  %v582 = vsel %vm98, %v581, %v568
  %v583 = vsel %vm553, %v582, %v571
  %v584 = vsel %vm100, %v583, %v574
  %v585 = vsel %vm187, %v584, %v577
  %v586 = vsub.f32 1.0, %v556
  %v588 = vlaneseq
  %v589 = vshrl.u32 %v588, 7
  %v590 = vsub.s32 0, %v589
  %v591 = vrot.slane %v74, %v590
  %v593 = vmul.f32 %v591, %v586
  %v594 = vsub.f32 1.0, %v593
  %v595 = vsub.f32 1.0, %v585
  %v597 = vlaneseq
  %v598 = vshrl.u32 %v597, 7
  %v599 = vsub.s32 0, %v598
  %v600 = vrot.slane %v81, %v599
  %v602 = vmul.f32 %v600, %v595
  %v603 = vsub.f32 1.0, %v602
  %v605 = vlaneseq
  %v606 = vshrl.u32 %v605, 7
  %v607 = vsub.s32 0, %v606
  %v608 = vrot.slane %v75, %v607
  %v610 = vmul.f32 %v608, %v556
  %v611 = vsub.f32 1.0, %v610
  %v613 = vlaneseq
  %v614 = vshrl.u32 %v613, 7
  %v615 = vsub.s32 0, %v614
  %v616 = vrot.slane %v83, %v615
  %v618 = vmul.f32 %v616, %v585
  %v619 = vsub.f32 1.0, %v618
  %624 = vrot.lane.b32.xlu0 %v594, 120
  %v625 = vpop.permute.xlu0 %624
  %626 = vrot.lane.b32.xlu0 %v603, 120
  %v627 = vpop.permute.xlu0 %626
  %628 = vrot.lane.b32.xlu0 %v611, 120
  %v629 = vpop.permute.xlu0 %628
  %630 = vrot.lane.b32.xlu0 %v619, 120
  %v631 = vpop.permute.xlu0 %630
  %v636 = vmul.f32 %v594, %v625
  %v637 = vmul.f32 %v603, %v627
  %v638 = vmul.f32 %v611, %v629
  %v639 = vmul.f32 %v619, %v631
  %644 = vrot.lane.b32.xlu0 %v636, 124
  %v645 = vpop.permute.xlu0 %644
  %646 = vrot.lane.b32.xlu0 %v637, 124
  %v647 = vpop.permute.xlu0 %646
  %648 = vrot.lane.b32.xlu0 %v638, 124
  %v649 = vpop.permute.xlu0 %648
  %650 = vrot.lane.b32.xlu0 %v639, 124
  %v651 = vpop.permute.xlu0 %650
  %v656 = vmul.f32 %v636, %v645
  %v657 = vmul.f32 %v637, %v647
  %v658 = vmul.f32 %v638, %v649
  %v659 = vmul.f32 %v639, %v651
  %664 = vrot.lane.b32.xlu0 %v656, 126
  %v665 = vpop.permute.xlu0 %664
  %666 = vrot.lane.b32.xlu0 %v657, 126
  %v667 = vpop.permute.xlu0 %666
  %668 = vrot.lane.b32.xlu0 %v658, 126
  %v669 = vpop.permute.xlu0 %668
  %670 = vrot.lane.b32.xlu0 %v659, 126
  %v671 = vpop.permute.xlu0 %670
  %v676 = vmul.f32 %v656, %v665
  %v677 = vmul.f32 %v657, %v667
  %v678 = vmul.f32 %v658, %v669
  %v679 = vmul.f32 %v659, %v671
  %684 = vrot.lane.b32.xlu0 %v676, 127
  %v685 = vpop.permute.xlu0 %684
  %686 = vrot.lane.b32.xlu0 %v677, 127
  %v687 = vpop.permute.xlu0 %686
  %688 = vrot.lane.b32.xlu0 %v678, 127
  %v689 = vpop.permute.xlu0 %688
  %690 = vrot.lane.b32.xlu0 %v679, 127
  %v691 = vpop.permute.xlu0 %690
  %v696 = vmul.f32 %v676, %v685
  %v697 = vmul.f32 %v677, %v687
  %v698 = vmul.f32 %v678, %v689
  %v699 = vmul.f32 %v679, %v691
  %704 = vrot.lane.b32.xlu0 %v696, 113
  %v705 = vpop.permute.xlu0 %704
  %706 = vrot.lane.b32.xlu0 %v697, 113
  %v707 = vpop.permute.xlu0 %706
  %708 = vrot.lane.b32.xlu0 %v698, 113
  %v709 = vpop.permute.xlu0 %708
  %710 = vrot.lane.b32.xlu0 %v699, 113
  %v711 = vpop.permute.xlu0 %710
  %716 = vrot.lane.b32.xlu0 %v696, 98
  %v717 = vpop.permute.xlu0 %716
  %718 = vrot.lane.b32.xlu0 %v697, 98
  %v719 = vpop.permute.xlu0 %718
  %720 = vrot.lane.b32.xlu0 %v698, 98
  %v721 = vpop.permute.xlu0 %720
  %722 = vrot.lane.b32.xlu0 %v699, 98
  %v723 = vpop.permute.xlu0 %722
  %728 = vrot.lane.b32.xlu0 %v696, 83
  %v729 = vpop.permute.xlu0 %728
  %730 = vrot.lane.b32.xlu0 %v697, 83
  %v731 = vpop.permute.xlu0 %730
  %732 = vrot.lane.b32.xlu0 %v698, 83
  %v733 = vpop.permute.xlu0 %732
  %734 = vrot.lane.b32.xlu0 %v699, 83
  %v735 = vpop.permute.xlu0 %734
  %740 = vrot.lane.b32.xlu0 %v696, 68
  %v741 = vpop.permute.xlu0 %740
  %742 = vrot.lane.b32.xlu0 %v697, 68
  %v743 = vpop.permute.xlu0 %742
  %744 = vrot.lane.b32.xlu0 %v698, 68
  %v745 = vpop.permute.xlu0 %744
  %746 = vrot.lane.b32.xlu0 %v699, 68
  %v747 = vpop.permute.xlu0 %746
  %752 = vrot.lane.b32.xlu0 %v696, 53
  %v753 = vpop.permute.xlu0 %752
  %754 = vrot.lane.b32.xlu0 %v697, 53
  %v755 = vpop.permute.xlu0 %754
  %756 = vrot.lane.b32.xlu0 %v698, 53
  %v757 = vpop.permute.xlu0 %756
  %758 = vrot.lane.b32.xlu0 %v699, 53
  %v759 = vpop.permute.xlu0 %758
  %764 = vrot.lane.b32.xlu0 %v696, 38
  %v765 = vpop.permute.xlu0 %764
  %766 = vrot.lane.b32.xlu0 %v697, 38
  %v767 = vpop.permute.xlu0 %766
  %768 = vrot.lane.b32.xlu0 %v698, 38
  %v769 = vpop.permute.xlu0 %768
  %770 = vrot.lane.b32.xlu0 %v699, 38
  %v771 = vpop.permute.xlu0 %770
  %776 = vrot.lane.b32.xlu0 %v696, 23
  %v777 = vpop.permute.xlu0 %776
  %778 = vrot.lane.b32.xlu0 %v697, 23
  %v779 = vpop.permute.xlu0 %778
  %780 = vrot.lane.b32.xlu0 %v698, 23
  %v781 = vpop.permute.xlu0 %780
  %782 = vrot.lane.b32.xlu0 %v699, 23
  %v783 = vpop.permute.xlu0 %782
  %v788 = vsel %vm480, %v696, %v705
  %v789 = vsel %vm480, %v697, %v707
  %v790 = vsel %vm480, %v698, %v709
  %v791 = vsel %vm480, %v699, %v711
  %v792 = vsel %vm68, %v788, %v717
  %v793 = vsel %vm68, %v789, %v719
  %v794 = vsel %vm68, %v790, %v721
  %v795 = vsel %vm68, %v791, %v723
  %v796 = vsel %vm489, %v792, %v729
  %v797 = vsel %vm489, %v793, %v731
  %v798 = vsel %vm489, %v794, %v733
  %v799 = vsel %vm489, %v795, %v735
  %v800 = vsel %vm45, %v796, %v741
  %v801 = vsel %vm45, %v797, %v743
  %v802 = vsel %vm45, %v798, %v745
  %v803 = vsel %vm45, %v799, %v747
  %v804 = vsel %vm498, %v800, %v753
  %v805 = vsel %vm498, %v801, %v755
  %v806 = vsel %vm498, %v802, %v757
  %v807 = vsel %vm498, %v803, %v759
  %v808 = vsel %vm503, %v804, %v765
  %v809 = vsel %vm503, %v805, %v767
  %v810 = vsel %vm503, %v806, %v769
  %v811 = vsel %vm503, %v807, %v771
  %v812 = vsel %vm508, %v808, %v777
  %v813 = vsel %vm508, %v809, %v779
  %v814 = vsel %vm508, %v810, %v781
  %v815 = vsel %vm508, %v811, %v783
  %v816 = vsub.f32 1.0, %v814
  %v817 = vsub.f32 1.0, %v815
  %819 = vrot.lane.b32.xlu0 %v816, 8
  %v820 = vpop.permute.xlu0 %819
  %v822 = vsel %vm47, %v812, %v820
  %824 = vrot.lane.b32.xlu0 %v817, 8
  %v825 = vpop.permute.xlu0 %824
  %v827 = vsel %vm47, %v813, %v825
  %v828 = vsel %vm547, %v822, %v527
  %v829 = vsel %vm547, %v827, %v559
  %v830 = vld [vmem:[%s6] sm:$0xff]
  %v831 = vld [vmem:[%s6 + $0x8] sm:$0xff]
  %v832 = vld [vmem:[%s6 + $0x10] sm:$0xff]
  %v833 = vld [vmem:[%s6 + $0x18] sm:$0xff]
  %v834 = vld [vmem:[%s7] sm:$0x1]
  %v836 = vlaneseq
  %v837 = vshrl.u32 %v836, 7
  %v838 = vsub.s32 0, %v837
  %v839 = vrot.slane %v834, %v838
  %v842 = vsel %vm96, %v828, 0
  %v845 = vsel %vm96, %v829, 0
  %847 = vmatprep.subr.mxu0 0.0
  %848 = vmatpush1.msra.mxu0 0.0
  %849 = vmatprep.subr.mxu0 0.0
  %850 = vmatpush1.msra.mxu0 0.0
  %851 = vmatprep.subr.mxu0 0.0
  %852 = vmatpush1.msra.mxu0 0.0
  %853 = vmatprep.subr.mxu0 0.0
  %854 = vmatpush1.msra.mxu0 0.0
  %855 = vmatprep.subr.mxu0 0.0
  %856 = vmatpush1.msra.mxu0 0.0
  %857 = vmatprep.subr.mxu0 0.0
  %858 = vmatpush1.msra.mxu0 0.0
  %859 = vmatprep.subr.mxu0 0.0
  %860 = vmatpush1.msra.mxu0 0.0
  %861 = vmatprep.subr.mxu0 0.0
  %862 = vmatpush1.msra.mxu0 0.0
  %863 = vmatprep.subr.mxu0 0.0
  %864 = vmatpush1.msra.mxu0 0.0
  %865 = vmatprep.subr.mxu0 0.0
  %866 = vmatpush1.msra.mxu0 0.0
  %867 = vmatprep.subr.mxu0 0.0
  %868 = vmatpush1.msra.mxu0 0.0
  %869 = vmatprep.subr.mxu0 0.0
  %870 = vmatpush1.msra.mxu0 0.0
  %871 = vmatprep.subr.mxu0 0.0
  %872 = vmatpush1.msra.mxu0 %v833
  %873 = vmatprep.subr.mxu0 0.0
  %874 = vmatpush1.msra.mxu0 %v832
  %875 = vmatprep.subr.mxu0 0.0
  %876 = vmatpush1.msra.mxu0 %v831
  %877 = vmatprep.subr.mxu0 0.0
  %878 = vmatpush1.msra.mxu0 %v830
  %879 = vmatprep.subr.mxu0 0.0
  %880 = vmatpush2.msra.mxu0 0.0
  %881 = vmatprep.subr.mxu0 0.0
  %882 = vmatpush2.msra.mxu0 0.0
  %883 = vmatprep.subr.mxu0 0.0
  %884 = vmatpush2.msra.mxu0 0.0
  %885 = vmatprep.subr.mxu0 0.0
  %886 = vmatpush2.msra.mxu0 0.0
  %887 = vmatprep.subr.mxu0 0.0
  %888 = vmatpush2.msra.mxu0 0.0
  %889 = vmatprep.subr.mxu0 0.0
  %890 = vmatpush2.msra.mxu0 0.0
  %891 = vmatprep.subr.mxu0 0.0
  %892 = vmatpush2.msra.mxu0 0.0
  %893 = vmatprep.subr.mxu0 0.0
  %894 = vmatpush2.msra.mxu0 0.0
  %895 = vmatprep.subr.mxu0 0.0
  %896 = vmatpush2.msra.mxu0 0.0
  %897 = vmatprep.subr.mxu0 0.0
  %898 = vmatpush2.msra.mxu0 0.0
  %899 = vmatprep.subr.mxu0 0.0
  %900 = vmatpush2.msra.mxu0 0.0
  %901 = vmatprep.subr.mxu0 0.0
  %902 = vmatpush2.msra.mxu0 0.0
  %903 = vmatprep.subr.mxu0 0.0
  %904 = vmatpush2.msra.mxu0 0.0
  %905 = vmatprep.subr.mxu0 0.0
  %906 = vmatpush2.msra.mxu0 0.0
  %907 = vmatprep.subr.mxu0 0.0
  %908 = vmatpush2.msra.mxu0 0.0
  %909 = vmatprep.subr.mxu0 0.0
  %910 = vmatpush2.msra.mxu0 0.0
  %911 = vmatprep.mubr.f32.mxu0 0.0
  %912 = vmatmul.mubr.f32.gmra.mxu0 %v842
  %v913 = vpop.f32.mrf.mxu0
  %v914 = vadd.f32 %v839, %v913
  %v915 = vpop.f32.mrf.mxu0
  %916 = vmatprep.mubr.f32.mxu0 0.0
  %917 = vmatmul.mubr.f32.gmra.mxu0 %v845
  %v918 = vpop.f32.mrf.mxu0
  %v919 = vadd.f32 %v839, %v918
  %v920 = vpop.f32.mrf.mxu0
  %921 = vdwg.mxu0
  %922 = vst.msk [vmem:[%s8] sm:$0xff] %vm45, %v914
  %923 = vst.msk [vmem:[%s9] sm:$0xff] %vm45, %v919
  // Predicated region
  $region34: #{mllp_forward.1} parent=0 // pred_check
    _
  $region35: #{mllp_forward.1} parent=0 // pred_check_branch
    %925 = sbr.rel (0) target = $region37
  $region36: #{mllp_forward.1} parent=0 // pred_region
    _
  $region37: #{mllp_forward.1} parent=0 // pred_fallthru
    _
  // Predicated region
  $region38: #{mllp_forward.1} parent=0 // pred_check
    _
  $region39: #{mllp_forward.1} parent=0 // pred_check_branch
    %927 = sbr.rel (0) target = $region41
  $region40: #{mllp_forward.1} parent=0 // pred_region
    _
  $region41: #{mllp_forward.1} parent=0 // pred_fallthru
    _
  // Predicated region
  $region42: #{mllp_forward.1} parent=0 // pred_check
    _
  $region43: #{mllp_forward.1} parent=0 // pred_check_branch
    %929 = sbr.rel (0) target = $region45
  $region44: #{mllp_forward.1} parent=0 // pred_region
    _
  $region45: #{mllp_forward.1} parent=0 // pred_fallthru
    _
  // Predicated region
  $region46: #{mllp_forward.1} parent=0 // pred_check
    _
  $region47: #{mllp_forward.1} parent=0 // pred_check_branch
    %931 = sbr.rel (0) target = $region49
  $region48: #{mllp_forward.1} parent=0 // pred_region
    _
  $region49: #{mllp_forward.1} parent=0 // pred_fallthru
    _

</llo_original>
